<compile_context>
chip_gen: v7x
topology: tpu7x:2x2x1
jax: 0.10.0
libtpu: 0.0.40
codegen_flags: <defaults>
</compile_context>

<pallas_src>
import jax
import jax.numpy as jnp
from jax.experimental import pallas as pl
from jax.experimental.pallas import tpu as pltpu

IN_FEATURES = 20
HIDDEN = 256
N_OUT = 10
OUT_PAD = 128        # lane-dense padded output width (multiple of 128)


def mlp_kernel(x_ref, w1_ref, b1_ref, w2_ref, b2_ref, o_ref):
    # x : (TB, 20)  f32  -> cast to bf16 in-kernel
    # w1: (20, 256) bf16,  b1: (1, 256) f32
    # w2: (256, 128) bf16 (cols 10..127 zero),  b2: (1, 128) f32 (cols 10..127 zero)
    # o : (TB, 128) bf16  (lane-dense padded output slab)
    x = x_ref[...].astype(jnp.bfloat16)
    h = jnp.dot(x, w1_ref[...], preferred_element_type=jnp.float32)      # f32 acc
    h = jnp.maximum(h + b1_ref[...], 0.0)                                # bias+ReLU in f32
    y = jnp.dot(h.astype(jnp.bfloat16), w2_ref[...],
                preferred_element_type=jnp.float32)                      # f32 acc
    o_ref[...] = (y + b2_ref[...]).astype(o_ref.dtype)


def prepare_params(w1, b1, w2, b2, compute_dtype=jnp.bfloat16):
    """One-time parameter prep (PyTorch (out,in) layout -> kernel layout)."""
    n_out = w2.shape[0]                                        # 10
    w1_t = w1.T.astype(compute_dtype)                          # (20, 256) bf16
    b1_2d = b1.reshape(1, -1).astype(jnp.float32)              # (1, 256) f32
    w2_t = jnp.zeros((w2.shape[1], OUT_PAD), compute_dtype)
    w2_t = w2_t.at[:, :n_out].set(w2.T.astype(compute_dtype))  # (256, 128) bf16
    b2_2d = jnp.zeros((1, OUT_PAD), jnp.float32)
    b2_2d = b2_2d.at[:, :n_out].set(b2.astype(jnp.float32))    # (1, 128) f32
    return w1_t, b1_2d, w2_t, b2_2d, n_out


def _round_up8(n):
    return ((n + 7) // 8) * 8


def _chip_tiling(batch):
    """Pick (batch tile, vmem_limit_bytes) for the current TPU generation."""
    try:
        kind = jax.devices()[0].device_kind.lower()
    except Exception:  # pragma: no cover - defensive fallback
        kind = ""
    if ("v5" in kind) or ("v6" in kind):
        # 128 MiB VMEM, single TensorCore: big tiles amortize the ~0.35 us/step
        # grid overhead; working set (x/out double buffers + (tb,256) h temps)
        # at tb=8192 is well under the 48 MiB scoped limit.
        max_tb, vmem = 8192, 48 * 1024 * 1024
    else:
        # v7x / unknown: 64 MiB VMEM and 2 TensorCores -> smaller tile, and for
        # large batches make sure the "parallel" batch axis has >= 2 grid steps
        # so both cores get work.
        max_tb, vmem = 4096, 32 * 1024 * 1024
        if batch > 256:
            max_tb = min(max_tb, _round_up8(pl.cdiv(batch, 2)))
    tb = min(max_tb, _round_up8(batch))
    return tb, vmem


def mlp_forward(x, params, tb=None, vmem_limit_bytes=None):
    """x: (B, 20) f32.  params: output of prepare_params.  Returns (B, 10) f32."""
    w1_t, b1_2d, w2_t, b2_2d, n_out = params
    B, in_features = x.shape

    auto_tb, auto_vmem = _chip_tiling(B)
    if tb is None:
        tb = auto_tb
    if vmem_limit_bytes is None:
        vmem_limit_bytes = auto_vmem
    grid_b = pl.cdiv(B, tb)

    out = pl.pallas_call(
        mlp_kernel,
        out_shape=jax.ShapeDtypeStruct((B, OUT_PAD), jnp.bfloat16),
        grid=(grid_b,),
        in_specs=[
            pl.BlockSpec((tb, in_features), lambda i: (i, 0)),   # x: batch-tiled
            pl.BlockSpec(w1_t.shape, lambda i: (0, 0)),          # weights resident
            pl.BlockSpec(b1_2d.shape, lambda i: (0, 0)),
            pl.BlockSpec(w2_t.shape, lambda i: (0, 0)),
            pl.BlockSpec(b2_2d.shape, lambda i: (0, 0)),
        ],
        out_specs=pl.BlockSpec((tb, OUT_PAD), lambda i: (i, 0)),  # lane-dense, bf16
        compiler_params=pltpu.CompilerParams(
            dimension_semantics=("parallel",),
            vmem_limit_bytes=vmem_limit_bytes,
        ),
    )(x, w1_t, b1_2d, w2_t, b2_2d)

    # In a real pipeline the consumer would read the padded bf16 slab directly;
    # here we slice the 10 valid columns and return f32 to match the PyTorch
    # module interface.  Under jit this is a single small fused copy.
    # TODO(synk): fuse this slice/cast into the downstream consumer.
    return out[:, :n_out].astype(jnp.float32)


if __name__ == "__main__":
    key = jax.random.PRNGKey(0)
    k_x, k_w1, k_b1, k_w2, k_b2 = jax.random.split(key, 5)

    B, IN, HID, OUT = 2, IN_FEATURES, HIDDEN, N_OUT

    # Deterministic synthetic parameters (PyTorch nn.Linear (out,in) layout).
    x = jax.random.normal(k_x, (B, IN), dtype=jnp.float32)
    w1 = jax.random.normal(k_w1, (HID, IN), dtype=jnp.float32) * 0.1
    b1 = jax.random.normal(k_b1, (HID,), dtype=jnp.float32) * 0.1
    w2 = jax.random.normal(k_w2, (OUT, HID), dtype=jnp.float32) * 0.1
    b2 = jax.random.normal(k_b2, (OUT,), dtype=jnp.float32) * 0.1

    params = prepare_params(w1, b1, w2, b2)          # one-time prep
    fwd = jax.jit(lambda xs: mlp_forward(xs, params))
    out = jax.block_until_ready(fwd(x))

    # Reference with the same bf16-operand / f32-accumulate math.
    xb = x.astype(jnp.bfloat16)
    w1b = w1.T.astype(jnp.bfloat16)
    w2b = w2.T.astype(jnp.bfloat16)
    h_ref = jnp.maximum(
        jnp.dot(xb, w1b, preferred_element_type=jnp.float32) + b1, 0.0)
    ref_bf16 = jnp.dot(h_ref.astype(jnp.bfloat16), w2b,
                       preferred_element_type=jnp.float32) + b2
    # Full-f32 PyTorch-equivalent forward.
    ref_f32 = jnp.maximum(x @ w1.T + b1, 0.0) @ w2.T + b2

    assert out.shape == (B, OUT)
    assert out.dtype == jnp.float32
    assert jnp.allclose(out, ref_bf16, atol=2e-2, rtol=2e-2)
    assert jnp.allclose(out, ref_f32, atol=6e-2, rtol=6e-2)

    print("KERNEL_OK")
</pallas_src>

<mosaic_0001>
module attributes {stable_mosaic.version = 11 : i64} {
  func.func @mlp_kernel(%arg0: i32, %arg1: memref<8x20xf32, #tpu.memory_space<vmem>>, %arg2: memref<20x256xbf16, #tpu.memory_space<vmem>>, %arg3: memref<1x256xf32, #tpu.memory_space<vmem>>, %arg4: memref<256x128xbf16, #tpu.memory_space<vmem>>, %arg5: memref<1x128xf32, #tpu.memory_space<vmem>>, %arg6: memref<8x128xbf16, #tpu.memory_space<vmem>>) attributes {dimension_semantics = [#tpu.dimension_semantics<parallel>], iteration_bounds = array<i64: 1>, scalar_prefetch = 0 : i64, scratch_operands = 0 : i64, tpu.core_type = #tpu.core_type<tc>, window_params = [{transform_indices = @transform_0, window_bounds = array<i64: 8, 20>}, {pipeline_mode = #tpu.pipeline_mode<synchronous>, transform_indices = @transform_1, window_bounds = array<i64: 20, 256>}, {pipeline_mode = #tpu.pipeline_mode<synchronous>, transform_indices = @transform_2, window_bounds = array<i64: 1, 256>}, {pipeline_mode = #tpu.pipeline_mode<synchronous>, transform_indices = @transform_3, window_bounds = array<i64: 256, 128>}, {pipeline_mode = #tpu.pipeline_mode<synchronous>, transform_indices = @transform_4, window_bounds = array<i64: 1, 128>}, {transform_indices = @transform_5, window_bounds = array<i64: 8, 128>}]} {
    %c0 = arith.constant 0 : index
    %c0_0 = arith.constant 0 : index
    %0 = vector.load %arg1[%c0, %c0_0] : memref<8x20xf32, #tpu.memory_space<vmem>>, vector<8x20xf32>
    %1 = arith.truncf %0 : vector<8x20xf32> to vector<8x20xbf16>
    %c0_1 = arith.constant 0 : index
    %c0_2 = arith.constant 0 : index
    %2 = vector.load %arg2[%c0_1, %c0_2] : memref<20x256xbf16, #tpu.memory_space<vmem>>, vector<20x256xbf16>
    %cst = arith.constant dense<0.000000e+00> : vector<8x256xf32>
    %3 = tpu.matmul %1, %2, %cst {dimension_numbers = #tpu.dot_dimension_numbers<[1], [0], [0], [1], [0, 0, 1, 1], [], []>} : vector<8x20xbf16>, vector<20x256xbf16>, vector<8x256xf32> -> vector<8x256xf32>
    %c0_3 = arith.constant 0 : index
    %c0_4 = arith.constant 0 : index
    %4 = vector.load %arg3[%c0_3, %c0_4] : memref<1x256xf32, #tpu.memory_space<vmem>>, vector<1x256xf32>
    %5 = vector.broadcast %4 : vector<1x256xf32> to vector<8x256xf32>
    %6 = arith.addf %3, %5 : vector<8x256xf32>
    %cst_5 = arith.constant 0.000000e+00 : f32
    %7 = vector.broadcast %cst_5 : f32 to vector<8x256xf32>
    %8 = arith.maximumf %6, %7 : vector<8x256xf32>
    %9 = arith.truncf %8 : vector<8x256xf32> to vector<8x256xbf16>
    %c0_6 = arith.constant 0 : index
    %c0_7 = arith.constant 0 : index
    %10 = vector.load %arg4[%c0_6, %c0_7] : memref<256x128xbf16, #tpu.memory_space<vmem>>, vector<256x128xbf16>
    %cst_8 = arith.constant dense<0.000000e+00> : vector<8x128xf32>
    %11 = tpu.matmul %9, %10, %cst_8 {dimension_numbers = #tpu.dot_dimension_numbers<[1], [0], [0], [1], [0, 0, 1, 1], [], []>} : vector<8x256xbf16>, vector<256x128xbf16>, vector<8x128xf32> -> vector<8x128xf32>
    %c0_9 = arith.constant 0 : index
    %c0_10 = arith.constant 0 : index
    %12 = vector.load %arg5[%c0_9, %c0_10] : memref<1x128xf32, #tpu.memory_space<vmem>>, vector<1x128xf32>
    %13 = vector.broadcast %12 : vector<1x128xf32> to vector<8x128xf32>
    %14 = arith.addf %11, %13 : vector<8x128xf32>
    %15 = arith.truncf %14 : vector<8x128xf32> to vector<8x128xbf16>
    %c0_11 = arith.constant 0 : index
    %c0_12 = arith.constant 0 : index
    %16 = vector.load %arg6[%c0_11, %c0_12] : memref<8x128xbf16, #tpu.memory_space<vmem>>, vector<8x128xbf16>
    tpu.vector_store %arg6[%c0_11, %c0_12], %15 {strides = array<i32>} : memref<8x128xbf16, #tpu.memory_space<vmem>>, vector<8x128xbf16>,
    return
  }
  func.func @transform_0(%arg0: i32) -> (i32, i32) {
    %c0_i32 = arith.constant 0 : i32
    %c0_i32_0 = arith.constant 0 : i32
    return %arg0, %c0_i32 : i32, i32
  }
  func.func @transform_1(%arg0: i32) -> (i32, i32) {
    %c0_i32 = arith.constant 0 : i32
    %c0_i32_0 = arith.constant 0 : i32
    %c0_i32_1 = arith.constant 0 : i32
    return %c0_i32, %c0_i32_0 : i32, i32
  }
  func.func @transform_2(%arg0: i32) -> (i32, i32) {
    %c0_i32 = arith.constant 0 : i32
    %c0_i32_0 = arith.constant 0 : i32
    %c0_i32_1 = arith.constant 0 : i32
    return %c0_i32, %c0_i32_0 : i32, i32
  }
  func.func @transform_3(%arg0: i32) -> (i32, i32) {
    %c0_i32 = arith.constant 0 : i32
    %c0_i32_0 = arith.constant 0 : i32
    %c0_i32_1 = arith.constant 0 : i32
    return %c0_i32, %c0_i32_0 : i32, i32
  }
  func.func @transform_4(%arg0: i32) -> (i32, i32) {
    %c0_i32 = arith.constant 0 : i32
    %c0_i32_0 = arith.constant 0 : i32
    %c0_i32_1 = arith.constant 0 : i32
    return %c0_i32, %c0_i32_0 : i32, i32
  }
  func.func @transform_5(%arg0: i32) -> (i32, i32) {
    %c0_i32 = arith.constant 0 : i32
    %c0_i32_0 = arith.constant 0 : i32
    return %arg0, %c0_i32 : i32, i32
  }
}

</mosaic_0001>

<llo_original>
// kernel: _lambda_.1
$region0: #{_lambda_.1}
  #allocation0 [shape = 'u32[]', space=smem, size = 0x4, offset = 0x4, fixed_abs, tag = 'smem constant byte address 0x4 - core index']
  #allocation1 [shape = 'u32[144,128]{1,0:T(1,128)}', space=vmem, size = 0x12000, scoped, tag = 'internal scratch']
  %s0 = inlined_call_operand.vmem [shape: f32[2,20], index: 0, kind: input, shape index: {}]
  %s1 = inlined_call_operand.hbm [shape: bf16[20,256], index: 1, kind: input, shape index: {}]
  %s2 = inlined_call_operand.vmem [shape: f32[1,256], index: 2, kind: input, shape index: {}]
  %s3 = inlined_call_operand.hbm [shape: bf16[256,128], index: 3, kind: input, shape index: {}]
  %s4 = inlined_call_operand.vmem [shape: f32[1,128], index: 4, kind: input, shape index: {}]
  %s5 = inlined_call_operand.vmem [shape: bf16[2,128], index: 5, kind: output, shape index: {}]
  %s6 = sld [smem:[#allocation0]]
  $region68: #{_lambda_.1} parent=0
    _
  %s8 = ssub.s32 1, %s6
  %s9 = scalar_select 0, %s8, %s6
  $region1: #{_lambda_.1} parent=0
    #allocation2 [shape = 'u8[12288]{0}', space=vmem, size = 0x3000, scoped, tag = 'input window, operand 1, single buffered']
    #allocation3 [shape = 's32[1]{0}', space=sflag, size = 0x4, scoped, tag = 'scoped memory for _lambda_.1']
    #allocation4 [shape = 'u8[65536]{0}', space=vmem, size = 0x10000, scoped, tag = 'input window, operand 3, single buffered']
    #allocation5 [shape = 's32[1]{0}', space=sflag, size = 0x4, scoped, tag = 'scoped memory for _lambda_.1']
    #allocation6 [shape = 'u8[2048]{0}', space=vmem, size = 0x800, scoped, tag = 'output window, operand 0, single buffered']
    %10 = vsyncpa [#allocation3], 0
    %11 = vsyncpa [#allocation5], 0
    // Predicated region
    $region2: #{_lambda_.1} parent=1 // pred_check
      _
    $region3: #{_lambda_.1} parent=1 // pred_check_branch
      %13 = sbr.rel (0) target = $region5
    $region4: #{_lambda_.1} parent=1 // pred_region
      _
    $region5: #{_lambda_.1} parent=1 // pred_fallthru
      _
    // Predicated region
    $region6: #{_lambda_.1} parent=1 // pred_check
      _
    $region7: #{_lambda_.1} parent=1 // pred_check_branch
      %15 = sbr.rel (0) target = $region9
    $region8: #{_lambda_.1} parent=1 // pred_region
      %s17 = ssub.s32 384, 384
      %18 = vsyncadd [#allocation3], %s17
      %s19 = sshll.u32 [#allocation2], 4
      %s20 = int_to_ptr.vmem [resolvable:$true] %s19
      %25 = dma.hbm_to_vmem [thread:$0]  %s1, 384, %s20, [#allocation3], 128, 128, 8
    $region9: #{_lambda_.1} parent=1 // pred_fallthru
      _
    // Predicated region
    $region10: #{_lambda_.1} parent=1 // pred_check
      _
    $region11: #{_lambda_.1} parent=1 // pred_check_branch
      %27 = sbr.rel (0) target = $region13
    $region12: #{_lambda_.1} parent=1 // pred_region
      _
    $region13: #{_lambda_.1} parent=1 // pred_fallthru
      _
    // Predicated region
    $region14: #{_lambda_.1} parent=1 // pred_check
      _
    $region15: #{_lambda_.1} parent=1 // pred_check_branch
      %29 = sbr.rel (0) target = $region17
    $region16: #{_lambda_.1} parent=1 // pred_region
      %s31 = ssub.s32 2048, 2048
      %32 = vsyncadd [#allocation5], %s31
      %s33 = sshll.u32 [#allocation4], 4
      %s34 = int_to_ptr.vmem [resolvable:$true] %s33
      %39 = dma.hbm_to_vmem [thread:$0]  %s3, 2048, %s34, [#allocation5], 64, 64, 4
    $region17: #{_lambda_.1} parent=1 // pred_fallthru
      _
    // Predicated region
    $region18: #{_lambda_.1} parent=1 // pred_check
      _
    $region19: #{_lambda_.1} parent=1 // pred_check_branch
      %41 = sbr.rel (0) target = $region21
    $region20: #{_lambda_.1} parent=1 // pred_region
      _
    $region21: #{_lambda_.1} parent=1 // pred_fallthru
      _
    // Predicated region
    $region22: #{_lambda_.1} parent=1 // pred_check
      _
    $region23: #{_lambda_.1} parent=1 // pred_check_branch
      %43 = sbr.rel (0) target = $region25
    $region24: #{_lambda_.1} parent=1 // pred_region
      %44 = dma.done [#allocation3], 384
    $region25: #{_lambda_.1} parent=1 // pred_fallthru
      _
    // Predicated region
    $region26: #{_lambda_.1} parent=1 // pred_check
      _
    $region27: #{_lambda_.1} parent=1 // pred_check_branch
      %46 = sbr.rel (0) target = $region29
    $region28: #{_lambda_.1} parent=1 // pred_region
      %47 = dma.done [#allocation5], 2048
    $region29: #{_lambda_.1} parent=1 // pred_fallthru
      _
    %v49 = vld [vmem:[%s0] sm:$0xff]
    %v50 = vpack.c.bf16 %v49, %v49
    %v51 = vld [vmem:[#allocation2] sm:$0xff]
    %v52 = vld [vmem:[#allocation2 + $0x8] sm:$0xff]
    %v53 = vld [vmem:[#allocation2 + $0x10] sm:$0x33]
    %v54 = vld [vmem:[%s2] sm:$0x3]
    %v56 = vlaneseq
    %v57 = vshrl.u32 %v56, 7
    %v58 = vsub.s32 0, %v57
    %v59 = vrot.slane %v54, %v58
    %v60 = vlaneseq
    %v61 = vshrl.u32 %v60, 7
    %v62 = vsub.s32 1, %v61
    %v63 = vrot.slane %v54, %v62
    %v69 = vunpack.c.l.b16 %v51
    %v70 = vunpack.c.h.b16 %v51
    %v71 = vunpack.c.l.b16 %v52
    %v72 = vunpack.c.h.b16 %v52
    %v73 = vunpack.c.l.b16 %v53
    %v74 = vunpack.c.h.b16 %v53
    %v75 = vpack.c.b16 %v71, %v69
    %v76 = vpack.c.b16 %v72, %v70
    %v77 = vpack.c.b16 %v73, %v73
    %v78 = vpack.c.b16 %v74, %v74
    %vm81 = vcmask 162816
    %v83 = vsel %vm81, %v50, 0
    %vm85 = vcmask 1041408
    %v87 = vsel %vm85, %v77, 0
    %v90 = vsel %vm85, %v78, 0
    %92 = vmatprep.subr.bf16.mxu0 %v76
    %93 = vmatpush1.bf16.msra.mxu0 %v75
    %94 = vmatprep.subr.bf16.mxu0 %v90
    %95 = vmatpush1.bf16.msra.mxu0 %v87
    %96 = vmatprep.subr.bf16.mxu0 0
    %97 = vmatpush1.bf16.msra.mxu0 0
    %98 = vmatprep.subr.bf16.mxu0 0
    %99 = vmatpush1.bf16.msra.mxu0 0
    %100 = vmatprep.subr.bf16.mxu0 0
    %101 = vmatpush1.bf16.msra.mxu0 0
    %102 = vmatprep.subr.bf16.mxu0 0
    %103 = vmatpush1.bf16.msra.mxu0 0
    %104 = vmatprep.subr.bf16.mxu0 0
    %105 = vmatpush1.bf16.msra.mxu0 0
    %106 = vmatprep.subr.bf16.mxu0 0
    %107 = vmatpush1.bf16.msra.mxu0 0
    %108 = vmatprep.subr.bf16.mxu0 0
    %109 = vmatpush1.bf16.msra.mxu0 0
    %110 = vmatprep.subr.bf16.mxu0 0
    %111 = vmatpush1.bf16.msra.mxu0 0
    %112 = vmatprep.subr.bf16.mxu0 0
    %113 = vmatpush1.bf16.msra.mxu0 0
    %114 = vmatprep.subr.bf16.mxu0 0
    %115 = vmatpush1.bf16.msra.mxu0 0
    %116 = vmatprep.subr.bf16.mxu0 0
    %117 = vmatpush1.bf16.msra.mxu0 0
    %118 = vmatprep.subr.bf16.mxu0 0
    %119 = vmatpush1.bf16.msra.mxu0 0
    %120 = vmatprep.subr.bf16.mxu0 0
    %121 = vmatpush1.bf16.msra.mxu0 0
    %122 = vmatprep.subr.bf16.mxu0 0
    %123 = vmatpush1.bf16.msra.mxu0 0
    %124 = vmatprep.mubr.bf16.mxu0 0
    %125 = vmatmul.mubr.bf16.gmra.mrb[0].mxu0 %v83
    %v126 = vpop.f32.mrb[0].mxu0
    %v127 = vadd.f32 %v59, %v126
    %v128 = vpop.f32.mrb[0].mxu0
    %v129 = vadd.f32 %v63, %v128
    %v130 = vpop.f32.mrb[0].mxu0
    %v131 = vpop.f32.mrb[0].mxu0
    %132 = vdwg.mxu0
    %v133 = vmax.f32 %v127, 0.0
    %v134 = vmax.f32 %v129, 0.0
    %v135 = vpack.c.bf16 %v133, %v133
    %v136 = vpack.c.bf16 %v134, %v134
    %v137 = vld [vmem:[#allocation4] sm:$0xf]
    %v138 = vld [vmem:[#allocation4 + $0x4] sm:$0xf]
    %v139 = vld [vmem:[#allocation4 + $0x8] sm:$0xf]
    %v140 = vld [vmem:[#allocation4 + $0xc] sm:$0xf]
    %v141 = vld [vmem:[#allocation4 + $0x10] sm:$0xf]
    %v142 = vld [vmem:[#allocation4 + $0x14] sm:$0xf]
    %v143 = vld [vmem:[#allocation4 + $0x18] sm:$0xf]
    %v144 = vld [vmem:[#allocation4 + $0x1c] sm:$0xf]
    %v145 = vld [vmem:[#allocation4 + $0x20] sm:$0xf]
    %v146 = vld [vmem:[#allocation4 + $0x24] sm:$0xf]
    %v147 = vld [vmem:[#allocation4 + $0x28] sm:$0xf]
    %v148 = vld [vmem:[#allocation4 + $0x2c] sm:$0xf]
    %v149 = vld [vmem:[#allocation4 + $0x30] sm:$0xf]
    %v150 = vld [vmem:[#allocation4 + $0x34] sm:$0xf]
    %v151 = vld [vmem:[#allocation4 + $0x38] sm:$0xf]
    %v152 = vld [vmem:[#allocation4 + $0x3c] sm:$0xf]
    %v153 = vld [vmem:[#allocation4 + $0x40] sm:$0xf]
    %v154 = vld [vmem:[#allocation4 + $0x44] sm:$0xf]
    %v155 = vld [vmem:[#allocation4 + $0x48] sm:$0xf]
    %v156 = vld [vmem:[#allocation4 + $0x4c] sm:$0xf]
    %v157 = vld [vmem:[#allocation4 + $0x50] sm:$0xf]
    %v158 = vld [vmem:[#allocation4 + $0x54] sm:$0xf]
    %v159 = vld [vmem:[#allocation4 + $0x58] sm:$0xf]
    %v160 = vld [vmem:[#allocation4 + $0x5c] sm:$0xf]
    %v161 = vld [vmem:[#allocation4 + $0x60] sm:$0xf]
    %v162 = vld [vmem:[#allocation4 + $0x64] sm:$0xf]
    %v163 = vld [vmem:[#allocation4 + $0x68] sm:$0xf]
    %v164 = vld [vmem:[#allocation4 + $0x6c] sm:$0xf]
    %v165 = vld [vmem:[#allocation4 + $0x70] sm:$0xf]
    %v166 = vld [vmem:[#allocation4 + $0x74] sm:$0xf]
    %v167 = vld [vmem:[#allocation4 + $0x78] sm:$0xf]
    %v168 = vld [vmem:[#allocation4 + $0x7c] sm:$0xf]
    %v169 = vld [vmem:[%s4] sm:$0x1]
    %v171 = vlaneseq
    %v172 = vshrl.u32 %v171, 7
    %v173 = vsub.s32 0, %v172
    %v174 = vrot.slane %v169, %v173
    %v208 = vunpack.c.l.b16 %v137
    %v209 = vunpack.c.l.b16 %v138
    %v210 = vunpack.c.l.b16 %v139
    %v211 = vunpack.c.l.b16 %v140
    %v212 = vunpack.c.l.b16 %v141
    %v213 = vunpack.c.l.b16 %v142
    %v214 = vunpack.c.l.b16 %v143
    %v215 = vunpack.c.l.b16 %v144
    %v216 = vunpack.c.l.b16 %v145
    %v217 = vunpack.c.l.b16 %v146
    %v218 = vunpack.c.l.b16 %v147
    %v219 = vunpack.c.l.b16 %v148
    %v220 = vunpack.c.l.b16 %v149
    %v221 = vunpack.c.l.b16 %v150
    %v222 = vunpack.c.l.b16 %v151
    %v223 = vunpack.c.l.b16 %v152
    %v224 = vunpack.c.l.b16 %v153
    %v225 = vunpack.c.l.b16 %v154
    %v226 = vunpack.c.l.b16 %v155
    %v227 = vunpack.c.l.b16 %v156
    %v228 = vunpack.c.l.b16 %v157
    %v229 = vunpack.c.l.b16 %v158
    %v230 = vunpack.c.l.b16 %v159
    %v231 = vunpack.c.l.b16 %v160
    %v232 = vunpack.c.l.b16 %v161
    %v233 = vunpack.c.l.b16 %v162
    %v234 = vunpack.c.l.b16 %v163
    %v235 = vunpack.c.l.b16 %v164
    %v236 = vunpack.c.l.b16 %v165
    %v237 = vunpack.c.l.b16 %v166
    %v238 = vunpack.c.l.b16 %v167
    %v239 = vunpack.c.l.b16 %v168
    %v240 = vpack.c.b16 %v209, %v208
    %v241 = vpack.c.b16 %v211, %v210
    %v242 = vpack.c.b16 %v213, %v212
    %v243 = vpack.c.b16 %v215, %v214
    %v244 = vpack.c.b16 %v217, %v216
    %v245 = vpack.c.b16 %v219, %v218
    %v246 = vpack.c.b16 %v221, %v220
    %v247 = vpack.c.b16 %v223, %v222
    %v248 = vpack.c.b16 %v225, %v224
    %v249 = vpack.c.b16 %v227, %v226
    %v250 = vpack.c.b16 %v229, %v228
    %v251 = vpack.c.b16 %v231, %v230
    %v252 = vpack.c.b16 %v233, %v232
    %v253 = vpack.c.b16 %v235, %v234
    %v254 = vpack.c.b16 %v237, %v236
    %v255 = vpack.c.b16 %v239, %v238
    %272 = vmatprep.subr.bf16.mxu0 0
    %273 = vmatpush1.bf16.msra.mxu0 %v240
    %274 = vmatprep.subr.bf16.mxu0 0
    %275 = vmatpush1.bf16.msra.mxu0 %v241
    %276 = vmatprep.subr.bf16.mxu0 0
    %277 = vmatpush1.bf16.msra.mxu0 %v242
    %278 = vmatprep.subr.bf16.mxu0 0
    %279 = vmatpush1.bf16.msra.mxu0 %v243
    %280 = vmatprep.subr.bf16.mxu0 0
    %281 = vmatpush1.bf16.msra.mxu0 %v244
    %282 = vmatprep.subr.bf16.mxu0 0
    %283 = vmatpush1.bf16.msra.mxu0 %v245
    %284 = vmatprep.subr.bf16.mxu0 0
    %285 = vmatpush1.bf16.msra.mxu0 %v246
    %286 = vmatprep.subr.bf16.mxu0 0
    %287 = vmatpush1.bf16.msra.mxu0 %v247
    %288 = vmatprep.subr.bf16.mxu0 0
    %289 = vmatpush1.bf16.msra.mxu0 %v248
    %290 = vmatprep.subr.bf16.mxu0 0
    %291 = vmatpush1.bf16.msra.mxu0 %v249
    %292 = vmatprep.subr.bf16.mxu0 0
    %293 = vmatpush1.bf16.msra.mxu0 %v250
    %294 = vmatprep.subr.bf16.mxu0 0
    %295 = vmatpush1.bf16.msra.mxu0 %v251
    %296 = vmatprep.subr.bf16.mxu0 0
    %297 = vmatpush1.bf16.msra.mxu0 %v252
    %298 = vmatprep.subr.bf16.mxu0 0
    %299 = vmatpush1.bf16.msra.mxu0 %v253
    %300 = vmatprep.subr.bf16.mxu0 0
    %301 = vmatpush1.bf16.msra.mxu0 %v254
    %302 = vmatprep.subr.bf16.mxu0 0
    %303 = vmatpush1.bf16.msra.mxu0 %v255
    %304 = vmatprep.mubr.bf16.mxu0 %v136
    %305 = vmatmul.mubr.bf16.gmra.mrb[0].mxu0 %v135
    %v306 = vpop.f32.mrb[0].mxu0
    %v307 = vadd.f32 %v174, %v306
    %v308 = vpop.f32.mrb[0].mxu0
    %v309 = vpop.f32.mrb[0].mxu0
    %v310 = vpop.f32.mrb[0].mxu0
    %311 = vdwg.mxu0
    %v312 = vpack.c.bf16 %v307, %v307
    %v315 = vunpack.c.l.s4 1966171168
    %v316 = vunpack.c.0.s8 %v315
    %v317 = vlaneseq
    %v318 = vshrl.u32 %v317, 7
    %v319 = vsub.s32 %v316, %v318
    %v320 = vrot.slane %v312, %v319
    %v321 = vcombine.high %v320, %v320
    %v323 = vunpack.c.l.s4 1966171168
    %v324 = vunpack.c.0.s8 %v323
    %v325 = vlaneseq
    %v326 = vshrl.u32 %v325, 7
    %v327 = vsub.s32 %v324, %v326
    %v328 = vrot.slane %v320, %v327
    %v330 = vunpack.c.l.s4 1966171168
    %v331 = vunpack.c.0.s8 %v330
    %v332 = vlaneseq
    %v333 = vshrl.u32 %v332, 7
    %v334 = vsub.s32 %v331, %v333
    %v335 = vrot.slane %v321, %v334
    %v336 = vcombine.high %v328, %v328
    %v337 = vcombine.high %v335, %v335
    %342 = vst [vmem:[#allocation6] sm:$0x1] %v328
    %343 = vst [vmem:[#allocation6 + $0x1] sm:$0x1] %v335
    %344 = vst [vmem:[#allocation6 + $0x2] sm:$0x1] %v336
    %345 = vst [vmem:[#allocation6 + $0x3] sm:$0x1] %v337
    // Predicated region
    $region30: #{_lambda_.1} parent=1 // pred_check
      _
    $region31: #{_lambda_.1} parent=1 // pred_check_branch
      %347 = sbr.rel (0) target = $region33
    $region32: #{_lambda_.1} parent=1 // pred_region
      // Predicated region
      $region34: #{_lambda_.1} parent=32 // pred_check
        _
      $region35: #{_lambda_.1} parent=32 // pred_check_branch
        %349 = sbr.rel (0) target = $region37
      $region36: #{_lambda_.1} parent=32 // pred_region
        // Predicated region
        $region38: #{_lambda_.1} parent=36 // pred_check
          _
        $region39: #{_lambda_.1} parent=36 // pred_check_branch
          %351 = sbr.rel target = $region41
        $region40: #{_lambda_.1} parent=36 // pred_region
          // Predicated region
          $region53: #{_lambda_.1} parent=40 // pred_check
            _
          $region54: #{_lambda_.1} parent=40 // pred_check_branch
            %366 = sbr.rel (0) target = $region56
          $region55: #{_lambda_.1} parent=40 // pred_region
            loop: start=0, step=1, limit=1
            $region57: #{_lambda_.1} parent=55 // loop_pre_header
              _
            $region58: #{_lambda_.1} parent=55 // loop_header
              %s369 = sphi 0, %s373
              %p370 = scmp.ge.s32.totalorder %s369, 1
              %s374 = sphi [#allocation6], [#allocation6]
              %s375 = sphi %s5, %s5
            $region59: #{_lambda_.1} parent=55 // loop_header_branch
              %372 = sbr.rel (%p370) target = $region63
            $region60: #{_lambda_.1} parent=55 // loop_body
              %v376 = vld [vmem:[%s374] sm:$0x1]
              %377 = vst [vmem:[%s375] sm:$0x1] %v376
            $region61: #{_lambda_.1} parent=55 // loop_footer
              %s373 = sadd.s32 1, %s369
            $region62: #{_lambda_.1} parent=55 // loop_footer_branch
              %368 = sbr.rel target = $region58
            $region63: #{_lambda_.1} parent=55 // loop_exit
              _
          $region56: #{_lambda_.1} parent=40 // pred_fallthru
            _
        $region41: #{_lambda_.1} parent=36 // pred_fallthru
          _
        // Predicated region
        $region42: #{_lambda_.1} parent=36 // pred_check
          _
        $region43: #{_lambda_.1} parent=36 // pred_check_branch
          %353 = sbr.rel (0) target = $region45
        $region44: #{_lambda_.1} parent=36 // pred_region
          loop: start=0, step=1, limit=1
          $region46: #{_lambda_.1} parent=44 // loop_pre_header
            _
          $region47: #{_lambda_.1} parent=44 // loop_header
            %s356 = sphi 0, %s360
            %p357 = scmp.ge.s32.totalorder %s356, 1
            %s361 = sphi [#allocation6], [#allocation6]
            %s362 = sphi %s5, %s5
          $region48: #{_lambda_.1} parent=44 // loop_header_branch
            %359 = sbr.rel (%p357) target = $region52
          $region49: #{_lambda_.1} parent=44 // loop_body
            %v363 = vld [vmem:[%s361] sm:$0x1]
            %364 = vst [vmem:[%s362] sm:$0x1] %v363
          $region50: #{_lambda_.1} parent=44 // loop_footer
            %s360 = sadd.s32 1, %s356
          $region51: #{_lambda_.1} parent=44 // loop_footer_branch
            %355 = sbr.rel target = $region47
          $region52: #{_lambda_.1} parent=44 // loop_exit
            _
        $region45: #{_lambda_.1} parent=36 // pred_fallthru
          _
      $region37: #{_lambda_.1} parent=32 // pred_fallthru
        _
      %378 = vnop
    $region33: #{_lambda_.1} parent=1 // pred_fallthru
      _
    // Predicated region
    $region64: #{_lambda_.1} parent=1 // pred_check
      _
    $region65: #{_lambda_.1} parent=1 // pred_check_branch
      %380 = sbr.rel (0) target = $region67
    $region66: #{_lambda_.1} parent=1 // pred_region
      _
    $region67: #{_lambda_.1} parent=1 // pred_fallthru
      _
    %381 = vsyncpa [#allocation3], 1
    %382 = vsyncpa [#allocation5], 1

</llo_original>
